<compile_context>
chip_gen: v7x
topology: tpu7x:2x2x1
jax: 0.10.0
libtpu: 0.0.40
codegen_flags: <defaults>
</compile_context>

<pallas_src>
import math

import jax
import jax.numpy as jnp
from jax.experimental import pallas as pl
from jax.experimental.pallas import tpu as pltpu

_MIB = 1024 * 1024


def _round_up(a: int, b: int) -> int:
    return (a + b - 1) // b * b


def _pad_dim(d: int, *, fine: int = 128, coarse: int = 256, threshold: int = 512) -> int:
    """Pad to a 128 multiple; large dims are bumped to 256 multiples so tiles
    can feed the 256-wide MXUs on v6e/v7x instead of collapsing to 128."""
    p = _round_up(d, fine)
    if p >= threshold:
        p = _round_up(d, coarse)
    return p


def _pick_tile(padded: int, cap: int) -> int:
    """Largest multiple of 128 <= cap that divides `padded` (padded % 128 == 0)."""
    best = 128
    t = 128
    limit = min(cap, padded)
    while t <= limit:
        if padded % t == 0:
            best = t
        t += 128
    return best


def _sublane(dtype) -> int:
    # f32 -> 8, bf16 -> 16, int8/fp8 -> 32 (packed-sublane alignment)
    return max(8, 32 // jnp.dtype(dtype).itemsize)


def _choose_tm(m: int, sub: int, cap: int):
    """Pick (tm, mp). Single exact-size M tile when it fits (no M padding to
    the tile size); otherwise the candidate tile minimizing padding."""
    m_aligned = _round_up(m, sub)
    if m_aligned <= cap:
        return m_aligned, m_aligned
    best_tm, best_pad = None, None
    for cand in (512, 384, 256, 128):
        if cand > cap or cand % sub:
            continue
        pad = _round_up(m, cand) - m
        if best_pad is None or pad < best_pad:
            best_tm, best_pad = cand, pad
    if best_tm is None:
        best_tm = _round_up(128, sub)
    return best_tm, _round_up(m, best_tm)


def _ensure_two_parallel_blocks(tm: int, mp: int, tn: int, np_: int, sub: int):
    """v7x has 2 TensorCores; a 1x1 parallel grid leaves one idle."""
    if (mp // tm) * (np_ // tn) >= 2:
        return tm, tn
    if tn >= 256 and (tn // 2) % 128 == 0:
        return tm, tn // 2
    if tm % (2 * sub) == 0 and tm // 2 >= sub:
        return tm // 2, tn
    return tm, tn


# ---------------------------------------------------------------------------
# Kernel body: acc += x_tile @ (2*W^T)_tile ; epilogue: out = acc + bias
# ---------------------------------------------------------------------------
def _mirror_kernel(x_ref, wT_ref, b_ref, o_ref, acc_ref):
    k = pl.program_id(2)

    @pl.when(k == 0)
    def _init():
        acc_ref[...] = jnp.zeros_like(acc_ref)

    acc_ref[...] += jnp.dot(
        x_ref[...], wT_ref[...], preferred_element_type=jnp.float32
    )

    @pl.when(k == pl.num_programs(2) - 1)
    def _finalize():
        # (x+0.5)@W^T + (x-0.5)@W^T + b == x@(2W^T) + b ; x2 folded into weight.
        o_ref[...] = (acc_ref[...] + b_ref[...]).astype(o_ref.dtype)


# ---------------------------------------------------------------------------
# One-time parameter preparation: 2*W^T, padded, cast to the compute dtype.
# Do NOT call this per forward.
# ---------------------------------------------------------------------------
def prepare_mirror_params(half_weight, bias, *, compute_dtype=jnp.bfloat16):
    out_features, in_features = half_weight.shape
    kp = _pad_dim(in_features)
    np_ = _pad_dim(out_features)
    wT2 = jnp.zeros((kp, np_), jnp.float32)
    wT2 = wT2.at[:in_features, :out_features].set(
        2.0 * half_weight.astype(jnp.float32).T
    )
    wT2 = wT2.astype(compute_dtype)
    b = jnp.zeros((1, np_), jnp.float32)  # bias kept f32; added on the f32 acc
    if bias is not None:
        b = b.at[0, :out_features].set(bias.astype(jnp.float32))
    return wT2, b, out_features


# ---------------------------------------------------------------------------
# Forward wrapper
# ---------------------------------------------------------------------------
def mirror_layer_forward(
    x,
    wT2_padded,          # (Kp, Np), already 2*W^T, padded, in compute dtype
    bias_padded,         # (1, Np), f32
    out_features,
    *,
    tile_m=512,
    tile_n=1024,
    tile_k=512,
    small_fast_path=True,
    fast_path_max_work=1 << 20,   # m * Np * Kp below this -> plain XLA dot
):
    kp, np_ = wT2_padded.shape
    in_features = x.shape[-1]
    lead = x.shape[:-1]
    m = math.prod(lead) if lead else 1
    out_dtype = x.dtype
    cdt = wT2_padded.dtype

    x2d = x.reshape(m, in_features)
    if x2d.dtype != cdt:
        x2d = x2d.astype(cdt)

    # ---- tiny-shape fast path: per-grid-step overhead would dominate -------
    if small_fast_path and m * np_ * kp <= fast_path_max_work:
        xf = x2d if in_features == kp else jnp.pad(
            x2d, ((0, 0), (0, kp - in_features)))
        y = jnp.dot(xf, wT2_padded, preferred_element_type=jnp.float32) + bias_padded
        return y[:, :out_features].astype(out_dtype).reshape(*lead, out_features)

    # ---- tile selection ------------------------------------------------------
    sub = _sublane(cdt)
    tm, mp = _choose_tm(m, sub, tile_m)
    tn = _pick_tile(np_, tile_n)
    tk = _pick_tile(kp, tile_k)
    tm, tn = _ensure_two_parallel_blocks(tm, mp, tn, np_, sub)

    if (mp, kp) != (m, in_features):
        x2d = jnp.pad(x2d, ((0, mp - m), (0, kp - in_features)))

    grid = (mp // tm, np_ // tn, kp // tk)

    xb = jnp.dtype(cdt).itemsize
    ob = jnp.dtype(out_dtype).itemsize
    # double-buffered in/out tiles + f32 accumulator
    vmem_est = 2 * (tm * tk * xb + tk * tn * xb + tn * 4 + tm * tn * ob) + tm * tn * 4
    vmem_limit = int(min(48 * _MIB, max(32 * _MIB, 1.5 * vmem_est)))

    bytes_accessed = (
        mp * kp * xb + kp * np_ * xb + np_ * 4 + mp * np_ * ob
    )

    out_padded = pl.pallas_call(
        _mirror_kernel,
        out_shape=jax.ShapeDtypeStruct((mp, np_), out_dtype),
        grid=grid,
        in_specs=[
            pl.BlockSpec((tm, tk), lambda i, j, k: (i, k)),   # x tile
            pl.BlockSpec((tk, tn), lambda i, j, k: (k, j)),   # (2*W^T) tile
            pl.BlockSpec((1, tn), lambda i, j, k: (0, j)),    # bias tile
        ],
        out_specs=pl.BlockSpec((tm, tn), lambda i, j, k: (i, j)),
        scratch_shapes=[pltpu.VMEM((tm, tn), jnp.float32)],
        compiler_params=pltpu.CompilerParams(
            dimension_semantics=("parallel", "parallel", "arbitrary"),
            vmem_limit_bytes=vmem_limit,
        ),
        cost_estimate=pl.CostEstimate(
            flops=2 * mp * np_ * kp,
            transcendentals=0,
            bytes_accessed=bytes_accessed,
        ),
    )(x2d, wT2_padded, bias_padded)

    out = out_padded[:m, :out_features]
    return out.reshape(*lead, out_features)


# ---------------------------------------------------------------------------
# Parameter init (matches MirrorLayer.reset_parameters) and pure-JAX reference
# ---------------------------------------------------------------------------
def init_mirror_layer_params(key, in_features, out_features, dtype=jnp.float32):
    kw, kb = jax.random.split(key)
    # kaiming_uniform_(a=sqrt(5)) on (out, in): bound = 1/sqrt(fan_in)
    bound = 1.0 / math.sqrt(in_features)
    half_weight = jax.random.uniform(
        kw, (out_features, in_features), dtype=dtype, minval=-bound, maxval=bound
    )
    half_weight_mirrored = half_weight  # copied at init; unused in forward math
    bias = jax.random.uniform(
        kb, (out_features,), dtype=dtype, minval=-bound, maxval=bound
    )
    return half_weight, half_weight_mirrored, bias


def mirror_layer_reference(x, half_weight, bias):
    """Pure-JAX reference matching the PyTorch forward exactly (full f32)."""
    h1 = jnp.matmul(x + 0.5, half_weight.T, precision=jax.lax.Precision.HIGHEST)
    h2 = jnp.matmul(x - 0.5, half_weight.T, precision=jax.lax.Precision.HIGHEST) + bias
    return h1 + h2


if __name__ == "__main__":
    key = jax.random.PRNGKey(0)

    # ---- Test 1: small spec shape (batch=2, seq=8, hidden=32), bf16 operands,
    #      fast path disabled to exercise the Pallas kernel itself.
    k_param, k_x, key = jax.random.split(key, 3)
    in_features, out_features = 32, 32
    batch, seq = 2, 8

    half_weight, _, bias = init_mirror_layer_params(k_param, in_features, out_features)
    wT_p, b_p, n_out = prepare_mirror_params(half_weight, bias)  # bf16 default
    x = jax.random.normal(k_x, (batch, seq, in_features), dtype=jnp.float32)

    out = jax.block_until_ready(
        mirror_layer_forward(x, wT_p, b_p, n_out, small_fast_path=False)
    )
    ref = mirror_layer_reference(x, half_weight, bias)
    assert out.shape == (batch, seq, out_features)
    assert jnp.allclose(out, ref, atol=3e-2, rtol=3e-2), "mismatch vs reference (small, bf16)"

    # ---- Test 2: multi-tile grid (K reduction over several steps), bf16.
    k_param2, k_x2, key = jax.random.split(key, 3)
    in2, out2 = 640, 80          # Kp=768 -> tk=384 (2 K-steps), Np=128
    batch2, seq2 = 3, 100        # m=300 -> single M tile of 304 rows

    hw2, _, b2 = init_mirror_layer_params(k_param2, in2, out2)
    wT2_p, b2_p, n_out2 = prepare_mirror_params(hw2, b2)  # bf16 default
    x2 = jax.random.normal(k_x2, (batch2, seq2, in2), dtype=jnp.float32)

    out_big = jax.block_until_ready(mirror_layer_forward(x2, wT2_p, b2_p, n_out2))
    ref_big = mirror_layer_reference(x2, hw2, b2)
    assert out_big.shape == (batch2, seq2, out2)
    assert jnp.allclose(out_big, ref_big, atol=5e-2, rtol=5e-2), "mismatch vs reference (tiled, bf16)"

    # ---- Test 3: f32 MXU operands (tight tolerance) on the tiled shape.
    wT2_f32, b2_f32, _ = prepare_mirror_params(hw2, b2, compute_dtype=jnp.float32)
    out_f32 = jax.block_until_ready(mirror_layer_forward(x2, wT2_f32, b2_f32, n_out2))
    assert jnp.allclose(out_f32, ref_big, atol=1e-3, rtol=1e-3), "mismatch vs reference (tiled, f32)"

    # ---- Test 4: small-shape fast path (default settings) matches too.
    out_fast = jax.block_until_ready(mirror_layer_forward(x, wT_p, b_p, n_out))
    assert out_fast.shape == (batch, seq, out_features)
    assert jnp.allclose(out_fast, ref, atol=3e-2, rtol=3e-2), "mismatch vs reference (fast path)"

    print("KERNEL_OK")
</pallas_src>

<mosaic_0001>
module attributes {stable_mosaic.version = 11 : i64} {
  func.func @_mirror_kernel(%arg0: i32, %arg1: i32, %arg2: i32, %arg3: memref<16x128xbf16, #tpu.memory_space<vmem>>, %arg4: memref<128x128xbf16, #tpu.memory_space<vmem>>, %arg5: memref<1x128xf32, #tpu.memory_space<vmem>>, %arg6: memref<16x128xf32, #tpu.memory_space<vmem>>, %arg7: memref<16x128xf32, #tpu.memory_space<vmem>>) attributes {dimension_semantics = [#tpu.dimension_semantics<parallel>, #tpu.dimension_semantics<parallel>, #tpu.dimension_semantics<arbitrary>], iteration_bounds = array<i64: 1, 1, 1>, scalar_prefetch = 0 : i64, scratch_operands = 1 : i64, tpu.core_type = #tpu.core_type<tc>, window_params = [{transform_indices = @transform_0, window_bounds = array<i64: 16, 128>}, {transform_indices = @transform_1, window_bounds = array<i64: 128, 128>}, {transform_indices = @transform_2, window_bounds = array<i64: 1, 128>}, {transform_indices = @transform_3, window_bounds = array<i64: 16, 128>}]} {
    %c0_i32 = arith.constant 0 : i32
    %0 = arith.cmpi eq, %arg2, %c0_i32 : i32
    %1 = arith.extui %0 : i1 to i32
    %c0_i32_0 = arith.constant 0 : i32
    %2 = arith.cmpi ne, %1, %c0_i32_0 : i32
    scf.if %2 {
      %cst_10 = arith.constant 0.000000e+00 : f32
      %12 = vector.broadcast %cst_10 : f32 to vector<16x128xf32>
      %c0_11 = arith.constant 0 : index
      %c0_12 = arith.constant 0 : index
      %13 = vector.load %arg7[%c0_11, %c0_12] : memref<16x128xf32, #tpu.memory_space<vmem>>, vector<16x128xf32>
      tpu.vector_store %arg7[%c0_11, %c0_12], %12 {strides = array<i32>} : memref<16x128xf32, #tpu.memory_space<vmem>>, vector<16x128xf32>,
    } else {
    }
    %c0 = arith.constant 0 : index
    %c0_1 = arith.constant 0 : index
    %3 = vector.load %arg7[%c0, %c0_1] : memref<16x128xf32, #tpu.memory_space<vmem>>, vector<16x128xf32>
    %c0_2 = arith.constant 0 : index
    %c0_3 = arith.constant 0 : index
    %4 = vector.load %arg3[%c0_2, %c0_3] : memref<16x128xbf16, #tpu.memory_space<vmem>>, vector<16x128xbf16>
    %c0_4 = arith.constant 0 : index
    %c0_5 = arith.constant 0 : index
    %5 = vector.load %arg4[%c0_4, %c0_5] : memref<128x128xbf16, #tpu.memory_space<vmem>>, vector<128x128xbf16>
    %cst = arith.constant dense<0.000000e+00> : vector<16x128xf32>
    %6 = tpu.matmul %4, %5, %cst {dimension_numbers = #tpu.dot_dimension_numbers<[1], [0], [0], [1], [0, 0, 1, 1], [], []>} : vector<16x128xbf16>, vector<128x128xbf16>, vector<16x128xf32> -> vector<16x128xf32>
    %7 = arith.addf %3, %6 : vector<16x128xf32>
    %c0_6 = arith.constant 0 : index
    %c0_7 = arith.constant 0 : index
    %8 = vector.load %arg7[%c0_6, %c0_7] : memref<16x128xf32, #tpu.memory_space<vmem>>, vector<16x128xf32>
    tpu.vector_store %arg7[%c0_6, %c0_7], %7 {strides = array<i32>} : memref<16x128xf32, #tpu.memory_space<vmem>>, vector<16x128xf32>,
    %c0_i32_8 = arith.constant 0 : i32
    %9 = arith.cmpi eq, %arg2, %c0_i32_8 : i32
    %10 = arith.extui %9 : i1 to i32
    %c0_i32_9 = arith.constant 0 : i32
    %11 = arith.cmpi ne, %10, %c0_i32_9 : i32
    scf.if %11 {
      %c0_10 = arith.constant 0 : index
      %c0_11 = arith.constant 0 : index
      %12 = vector.load %arg7[%c0_10, %c0_11] : memref<16x128xf32, #tpu.memory_space<vmem>>, vector<16x128xf32>
      %c0_12 = arith.constant 0 : index
      %c0_13 = arith.constant 0 : index
      %13 = vector.load %arg5[%c0_12, %c0_13] : memref<1x128xf32, #tpu.memory_space<vmem>>, vector<1x128xf32>
      %14 = vector.broadcast %13 : vector<1x128xf32> to vector<16x128xf32>
      %15 = arith.addf %12, %14 : vector<16x128xf32>
      %c0_14 = arith.constant 0 : index
      %c0_15 = arith.constant 0 : index
      %16 = vector.load %arg6[%c0_14, %c0_15] : memref<16x128xf32, #tpu.memory_space<vmem>>, vector<16x128xf32>
      tpu.vector_store %arg6[%c0_14, %c0_15], %15 {strides = array<i32>} : memref<16x128xf32, #tpu.memory_space<vmem>>, vector<16x128xf32>,
    } else {
    }
    return
  }
  func.func @transform_0(%arg0: i32, %arg1: i32, %arg2: i32) -> (i32, i32) {
    %c0_i32 = arith.constant 0 : i32
    return %arg0, %arg2 : i32, i32
  }
  func.func @transform_1(%arg0: i32, %arg1: i32, %arg2: i32) -> (i32, i32) {
    %c0_i32 = arith.constant 0 : i32
    return %arg2, %arg1 : i32, i32
  }
  func.func @transform_2(%arg0: i32, %arg1: i32, %arg2: i32) -> (i32, i32) {
    %c0_i32 = arith.constant 0 : i32
    %c0_i32_0 = arith.constant 0 : i32
    return %c0_i32, %arg1 : i32, i32
  }
  func.func @transform_3(%arg0: i32, %arg1: i32, %arg2: i32) -> (i32, i32) {
    %c0_i32 = arith.constant 0 : i32
    return %arg0, %arg1 : i32, i32
  }
}

</mosaic_0001>

<llo_original>
// kernel: tpu_custom_call.1
$region0: #{tpu_custom_call.1}
  #allocation0 [shape = 'u32[]', space=smem, size = 0x4, offset = 0x4, fixed_abs, tag = 'smem constant byte address 0x4 - core index']
  #allocation1 [shape = 'u32[144,128]{1,0:T(1,128)}', space=vmem, size = 0x12000, scoped, tag = 'internal scratch']
  #allocation2 [shape = 'f32[16,128]{1,0:T(8,128)}', space=vmem, size = 0x2000, scoped, tag = 'scratch operand']
  %s0 = inlined_call_operand.hbm [shape: bf16[16,128], index: 0, kind: input, shape index: {}]
  %s1 = inlined_call_operand.hbm [shape: bf16[128,128], index: 1, kind: input, shape index: {}]
  %s2 = inlined_call_operand.vmem [shape: f32[1,128], index: 2, kind: input, shape index: {}]
  %s3 = inlined_call_operand.hbm [shape: f32[16,128], index: 3, kind: output, shape index: {}]
  %s4 = sld [smem:[#allocation0]]
  $region38: #{tpu_custom_call.1} parent=0
    _
  %s6 = ssub.s32 1, %s4
  %s7 = scalar_select 0, %s6, %s4
  $region1: #{tpu_custom_call.1} parent=0
    #allocation3 [shape = 'u8[4096]{0}', space=vmem, size = 0x1000, scoped, tag = 'input window, operand 0, single buffered']
    #allocation4 [shape = 's32[1]{0}', space=sflag, size = 0x4, scoped, tag = 'scoped memory for tpu_custom_call.1']
    #allocation5 [shape = 's32[1]{0}', space=sflag, size = 0x4, scoped, tag = 'scoped memory for tpu_custom_call.1']
    #allocation6 [shape = 'u8[32768]{0}', space=vmem, size = 0x8000, scoped, tag = 'input window, operand 1, single buffered']
    #allocation7 [shape = 's32[1]{0}', space=sflag, size = 0x4, scoped, tag = 'scoped memory for tpu_custom_call.1']
    #allocation8 [shape = 'u8[8192]{0}', space=vmem, size = 0x2000, scoped, tag = 'output window, operand 0, single buffered']
    %8 = vsyncpa [#allocation4], 0
    %9 = vsyncpa [#allocation7], 0
    %10 = vsyncpa [#allocation5], 0
    // Predicated region
    $region2: #{tpu_custom_call.1} parent=1 // pred_check
      _
    $region3: #{tpu_custom_call.1} parent=1 // pred_check_branch
      %12 = sbr.rel (0) target = $region5
    $region4: #{tpu_custom_call.1} parent=1 // pred_region
      %s14 = ssub.s32 128, 128
      %15 = vsyncadd [#allocation4], %s14
      %s16 = sshll.u32 [#allocation3], 4
      %s17 = int_to_ptr.vmem [resolvable:$true] %s16
      %22 = dma.hbm_to_vmem [thread:$0]  %s0, 128, %s17, [#allocation4], 64, 64, 4
    $region5: #{tpu_custom_call.1} parent=1 // pred_fallthru
      _
    // Predicated region
    $region6: #{tpu_custom_call.1} parent=1 // pred_check
      _
    $region7: #{tpu_custom_call.1} parent=1 // pred_check_branch
      %24 = sbr.rel (0) target = $region9
    $region8: #{tpu_custom_call.1} parent=1 // pred_region
      %s26 = ssub.s32 1024, 1024
      %27 = vsyncadd [#allocation7], %s26
      %s28 = sshll.u32 [#allocation6], 4
      %s29 = int_to_ptr.vmem [resolvable:$true] %s28
      %34 = dma.hbm_to_vmem [thread:$0]  %s1, 1024, %s29, [#allocation7], 64, 64, 4
    $region9: #{tpu_custom_call.1} parent=1 // pred_fallthru
      _
    // Predicated region
    $region10: #{tpu_custom_call.1} parent=1 // pred_check
      _
    $region11: #{tpu_custom_call.1} parent=1 // pred_check_branch
      %36 = sbr.rel (0) target = $region13
    $region12: #{tpu_custom_call.1} parent=1 // pred_region
      _
    $region13: #{tpu_custom_call.1} parent=1 // pred_fallthru
      _
    // Predicated region
    $region14: #{tpu_custom_call.1} parent=1 // pred_check
      _
    $region15: #{tpu_custom_call.1} parent=1 // pred_check_branch
      %38 = sbr.rel (0) target = $region17
    $region16: #{tpu_custom_call.1} parent=1 // pred_region
      %39 = dma.done [#allocation4], 128
    $region17: #{tpu_custom_call.1} parent=1 // pred_fallthru
      _
    // Predicated region
    $region18: #{tpu_custom_call.1} parent=1 // pred_check
      _
    $region19: #{tpu_custom_call.1} parent=1 // pred_check_branch
      %41 = sbr.rel (0) target = $region21
    $region20: #{tpu_custom_call.1} parent=1 // pred_region
      %42 = dma.done [#allocation7], 1024
    $region21: #{tpu_custom_call.1} parent=1 // pred_fallthru
      _
    %p44 = scmp.eq.s32.totalorder 0, 0
    // Predicated region
    $region22: #{tpu_custom_call.1} parent=1 // pred_check
      %p45 = pneg %p44
    $region23: #{tpu_custom_call.1} parent=1 // pred_check_branch
      %47 = sbr.rel (%p45) target = $region25
    $region24: #{tpu_custom_call.1} parent=1 // pred_region
      %48 = vst [vmem:[#allocation2] sm:$0xff] 0.0
      %49 = vst [vmem:[#allocation2 + $0x8] sm:$0xff] 0.0
    $region25: #{tpu_custom_call.1} parent=1 // pred_fallthru
      _
    %v50 = vld [vmem:[#allocation2] sm:$0xff]
    %v51 = vld [vmem:[#allocation2 + $0x8] sm:$0xff]
    %v52 = vld [vmem:[#allocation3] sm:$0xf]
    %v53 = vld [vmem:[#allocation3 + $0x4] sm:$0xf]
    %v54 = vld [vmem:[#allocation6] sm:$0xf]
    %v55 = vld [vmem:[#allocation6 + $0x4] sm:$0xf]
    %v56 = vld [vmem:[#allocation6 + $0x8] sm:$0xf]
    %v57 = vld [vmem:[#allocation6 + $0xc] sm:$0xf]
    %v58 = vld [vmem:[#allocation6 + $0x10] sm:$0xf]
    %v59 = vld [vmem:[#allocation6 + $0x14] sm:$0xf]
    %v60 = vld [vmem:[#allocation6 + $0x18] sm:$0xf]
    %v61 = vld [vmem:[#allocation6 + $0x1c] sm:$0xf]
    %v62 = vld [vmem:[#allocation6 + $0x20] sm:$0xf]
    %v63 = vld [vmem:[#allocation6 + $0x24] sm:$0xf]
    %v64 = vld [vmem:[#allocation6 + $0x28] sm:$0xf]
    %v65 = vld [vmem:[#allocation6 + $0x2c] sm:$0xf]
    %v66 = vld [vmem:[#allocation6 + $0x30] sm:$0xf]
    %v67 = vld [vmem:[#allocation6 + $0x34] sm:$0xf]
    %v68 = vld [vmem:[#allocation6 + $0x38] sm:$0xf]
    %v69 = vld [vmem:[#allocation6 + $0x3c] sm:$0xf]
    %v72 = vunpack.c.l.b16 %v52
    %v73 = vunpack.c.l.b16 %v53
    %v74 = vpack.c.b16 %v73, %v72
    %v92 = vunpack.c.l.b16 %v54
    %v93 = vunpack.c.l.b16 %v55
    %v94 = vunpack.c.l.b16 %v56
    %v95 = vunpack.c.l.b16 %v57
    %v96 = vunpack.c.l.b16 %v58
    %v97 = vunpack.c.l.b16 %v59
    %v98 = vunpack.c.l.b16 %v60
    %v99 = vunpack.c.l.b16 %v61
    %v100 = vunpack.c.l.b16 %v62
    %v101 = vunpack.c.l.b16 %v63
    %v102 = vunpack.c.l.b16 %v64
    %v103 = vunpack.c.l.b16 %v65
    %v104 = vunpack.c.l.b16 %v66
    %v105 = vunpack.c.l.b16 %v67
    %v106 = vunpack.c.l.b16 %v68
    %v107 = vunpack.c.l.b16 %v69
    %v108 = vpack.c.b16 %v93, %v92
    %v109 = vpack.c.b16 %v95, %v94
    %v110 = vpack.c.b16 %v97, %v96
    %v111 = vpack.c.b16 %v99, %v98
    %v112 = vpack.c.b16 %v101, %v100
    %v113 = vpack.c.b16 %v103, %v102
    %v114 = vpack.c.b16 %v105, %v104
    %v115 = vpack.c.b16 %v107, %v106
    %124 = vmatprep.subr.bf16.mxu0 0
    %125 = vmatpush1.bf16.msra.mxu0 %v108
    %126 = vmatprep.subr.bf16.mxu0 0
    %127 = vmatpush1.bf16.msra.mxu0 %v109
    %128 = vmatprep.subr.bf16.mxu0 0
    %129 = vmatpush1.bf16.msra.mxu0 %v110
    %130 = vmatprep.subr.bf16.mxu0 0
    %131 = vmatpush1.bf16.msra.mxu0 %v111
    %132 = vmatprep.subr.bf16.mxu0 0
    %133 = vmatpush1.bf16.msra.mxu0 %v112
    %134 = vmatprep.subr.bf16.mxu0 0
    %135 = vmatpush1.bf16.msra.mxu0 %v113
    %136 = vmatprep.subr.bf16.mxu0 0
    %137 = vmatpush1.bf16.msra.mxu0 %v114
    %138 = vmatprep.subr.bf16.mxu0 0
    %139 = vmatpush1.bf16.msra.mxu0 %v115
    %140 = vmatprep.subr.bf16.mxu0 0
    %141 = vmatpush1.bf16.msra.mxu0 0
    %142 = vmatprep.subr.bf16.mxu0 0
    %143 = vmatpush1.bf16.msra.mxu0 0
    %144 = vmatprep.subr.bf16.mxu0 0
    %145 = vmatpush1.bf16.msra.mxu0 0
    %146 = vmatprep.subr.bf16.mxu0 0
    %147 = vmatpush1.bf16.msra.mxu0 0
    %148 = vmatprep.subr.bf16.mxu0 0
    %149 = vmatpush1.bf16.msra.mxu0 0
    %150 = vmatprep.subr.bf16.mxu0 0
    %151 = vmatpush1.bf16.msra.mxu0 0
    %152 = vmatprep.subr.bf16.mxu0 0
    %153 = vmatpush1.bf16.msra.mxu0 0
    %154 = vmatprep.subr.bf16.mxu0 0
    %155 = vmatpush1.bf16.msra.mxu0 0
    %156 = vmatprep.mubr.bf16.mxu0 0
    %157 = vmatmul.mubr.bf16.gmra.mrb[0].mxu0 %v74
    %v158 = vpop.f32.mrb[0].mxu0
    %v159 = vadd.f32 0.0, %v158
    %v160 = vpop.f32.mrb[0].mxu0
    %v161 = vpop.f32.mrb[0].mxu0
    %v162 = vadd.f32 0.0, %v161
    %v163 = vpop.f32.mrb[0].mxu0
    %164 = vdwg.mxu0
    %v165 = vadd.f32 %v50, %v159
    %v166 = vadd.f32 %v51, %v162
    %167 = vst [vmem:[#allocation2] sm:$0xff] %v165
    %168 = vst [vmem:[#allocation2 + $0x8] sm:$0xff] %v166
    // Predicated region
    $region26: #{tpu_custom_call.1} parent=1 // pred_check
      %p169 = pneg %p44
    $region27: #{tpu_custom_call.1} parent=1 // pred_check_branch
      %171 = sbr.rel (%p169) target = $region29
    $region28: #{tpu_custom_call.1} parent=1 // pred_region
      %v172 = vld [vmem:[#allocation2] sm:$0xff]
      %v173 = vld [vmem:[#allocation2 + $0x8] sm:$0xff]
      %v174 = vld [vmem:[%s2] sm:$0x1]
      %v176 = vlaneseq
      %v177 = vshrl.u32 %v176, 7
      %v178 = vsub.s32 0, %v177
      %v179 = vrot.slane %v174, %v178
      %v181 = vadd.f32 %v172, %v179
      %v182 = vadd.f32 %v173, %v179
      %183 = vst [vmem:[#allocation8] sm:$0xff] %v181
      %184 = vst [vmem:[#allocation8 + $0x8] sm:$0xff] %v182
    $region29: #{tpu_custom_call.1} parent=1 // pred_fallthru
      _
    // Predicated region
    $region30: #{tpu_custom_call.1} parent=1 // pred_check
      _
    $region31: #{tpu_custom_call.1} parent=1 // pred_check_branch
      %186 = sbr.rel (0) target = $region33
    $region32: #{tpu_custom_call.1} parent=1 // pred_region
      %s188 = ssub.s32 256, 256
      %189 = vsyncadd [#allocation5], %s188
      %s190 = sshll.u32 [#allocation8], 4
      %s191 = int_to_ptr.vmem [resolvable:$true] %s190
      %196 = dma.vmem_to_hbm [thread:$0]  %s191, 256, %s3, [#allocation5], 128, 128, 8
    $region33: #{tpu_custom_call.1} parent=1 // pred_fallthru
      _
    // Predicated region
    $region34: #{tpu_custom_call.1} parent=1 // pred_check
      _
    $region35: #{tpu_custom_call.1} parent=1 // pred_check_branch
      %198 = sbr.rel (0) target = $region37
    $region36: #{tpu_custom_call.1} parent=1 // pred_region
      %199 = dma.done [#allocation5], 256
    $region37: #{tpu_custom_call.1} parent=1 // pred_fallthru
      _
    %200 = vsyncpa [#allocation4], 1
    %201 = vsyncpa [#allocation7], 1
    %202 = vsyncpa [#allocation5], 1

</llo_original>
